<compile_context>
chip_gen: v5e
topology: v5e:2x2
jax: 0.10.0
libtpu: 0.0.40
codegen_flags: <defaults>
</compile_context>

<pallas_src>
import functools

import jax
import jax.numpy as jnp
from jax.experimental import pallas as pl
from jax.experimental.pallas import tpu as pltpu


def _pairwise_sumexp_kernel(q_ref, r_ref, qs_ref, rs_ref, o_ref, l_sc,
                            *, two_inv_bw, nr_valid, tr, mask_cols):
    """Accumulates l[q] = sum_j exp(-||q - r_j||^2 / bw); stores log(l) at end.

    Grid: (query blocks, reference blocks); reference axis is the reduction
    axis (running-sum scratch, init/finalize via pl.when).
    """
    k = pl.program_id(1)

    @pl.when(k == 0)
    def _():
        l_sc[...] = jnp.zeros_like(l_sc)

    # (tq, D) x (tr, D) -> (tq, tr), contraction over the shared feature dim.
    qr = jax.lax.dot_general(
        q_ref[...], r_ref[...],
        dimension_numbers=(((1,), (1,)), ((), ())),
        preferred_element_type=jnp.float32)

    # s = -(||q||^2 + ||r||^2 - 2 q.r) / bw  with norms pre-scaled by 1/bw.
    # s <= 0 always, so exp(s) <= 1 and no running-max is needed.
    s = qr * two_inv_bw - qs_ref[...] - rs_ref[...]          # (tq, tr)
    p = jnp.exp(s)

    if mask_cols:
        cols = k * tr + jax.lax.broadcasted_iota(jnp.int32, p.shape, 1)
        p = jnp.where(cols < nr_valid, p, 0.0)

    l_sc[...] += jnp.sum(p, axis=-1, keepdims=True)

    @pl.when(k == pl.num_programs(1) - 1)
    def _():
        o_ref[...] = jnp.log(l_sc[...])


def _round_up(n, m):
    return ((n + m - 1) // m) * m


def pairwise_lse(Q, R, bandwidth, *, tq_max=128, tr_max=256):
    """Returns (Nq,) vector: lse[i] = logsumexp_j( -||Q_i - R_j||^2 / bandwidth )."""
    Nq, D = Q.shape
    Nr, Dr = R.shape
    assert D == Dr
    inv_bw = 1.0 / float(bandwidth)

    # Tile sizes: cap at the (8-aligned) problem size for tiny inputs; for big
    # inputs use large tiles so per-step overhead is amortized. tr_max is a
    # multiple of 128 so the (1, tr) norm block stays lane-aligned.
    tq = tq_max if Nq > tq_max else _round_up(Nq, 8)
    tr = tr_max if Nr > tr_max else _round_up(Nr, 8)
    Nq_pad = _round_up(Nq, tq)
    Nr_pad = _round_up(Nr, tr)

    Qp = jnp.pad(Q, ((0, Nq_pad - Nq), (0, 0)))
    Rp = jnp.pad(R, ((0, Nr_pad - Nr), (0, 0)))

    # Hoisted, pre-scaled squared norms (computed once, streamed per block).
    qs = jnp.sum(Qp.astype(jnp.float32) ** 2, axis=-1, keepdims=True) * inv_bw
    rs = (jnp.sum(Rp.astype(jnp.float32) ** 2, axis=-1, keepdims=True).T
          * inv_bw)                                           # (1, Nr_pad)

    kernel = functools.partial(
        _pairwise_sumexp_kernel,
        two_inv_bw=2.0 * inv_bw,
        nr_valid=Nr,
        tr=tr,
        mask_cols=(Nr_pad != Nr))

    out = pl.pallas_call(
        kernel,
        out_shape=jax.ShapeDtypeStruct((Nq_pad, 1), jnp.float32),
        grid_spec=pltpu.PrefetchScalarGridSpec(
            num_scalar_prefetch=0,
            grid=(Nq_pad // tq, Nr_pad // tr),
            in_specs=[
                pl.BlockSpec((tq, D), lambda i, k: (i, 0)),   # query block
                pl.BlockSpec((tr, D), lambda i, k: (k, 0)),   # reference block
                pl.BlockSpec((tq, 1), lambda i, k: (i, 0)),   # ||q||^2 / bw
                pl.BlockSpec((1, tr), lambda i, k: (0, k)),   # ||r||^2 / bw
            ],
            out_specs=pl.BlockSpec((tq, 1), lambda i, k: (i, 0)),
            scratch_shapes=[
                pltpu.VMEM((tq, 1), jnp.float32),             # running sum(exp)
            ],
        ),
        compiler_params=pltpu.CompilerParams(
            dimension_semantics=("parallel", "arbitrary")),
    )(Qp, Rp, qs, rs)
    return out[:Nq, 0]


def mmd(X, Y, bandwidth):
    """Mirrors MMD.forward(X, Y) from the PyTorch module (scalar output)."""
    Nx = X.shape[0]
    Ny = Y.shape[0]

    # Fused pass over reference set X: queries [X; Y] give both xx and xy rows.
    lse_vs_x = pairwise_lse(jnp.concatenate([X, Y], axis=0), X, bandwidth)
    lse_xx = lse_vs_x[:Nx]
    lse_xy = lse_vs_x[Nx:]
    lse_yy = pairwise_lse(Y, Y, bandwidth)

    xx = (jnp.exp(jax.nn.logsumexp(lse_xx)) - Nx) / (Nx * (Nx - 1))
    xy = jnp.exp(jax.nn.logsumexp(lse_xy)) / (Nx * Ny)
    yy = (jnp.exp(jax.nn.logsumexp(lse_yy)) - Ny) / (Ny * (Ny - 1))
    return xx - 2.0 * xy + yy


def mmd_ref(X, Y, bandwidth):
    """Pure-JAX reference (same math as the PyTorch module)."""
    def lse_rows(Q, R):
        d = jnp.sum((R[None, :, :] - Q[:, None, :]) ** 2, axis=-1)
        return jax.nn.logsumexp(-d / bandwidth, axis=1)

    Nx, Ny = X.shape[0], Y.shape[0]
    xx = (jnp.exp(jax.nn.logsumexp(lse_rows(X, X))) - Nx) / (Nx * (Nx - 1))
    xy = jnp.exp(jax.nn.logsumexp(lse_rows(Y, X))) / (Nx * Ny)
    yy = (jnp.exp(jax.nn.logsumexp(lse_rows(Y, Y))) - Ny) / (Ny * (Ny - 1))
    return xx - 2.0 * xy + yy


if __name__ == "__main__":
    key = jax.random.PRNGKey(0)
    kx, ky = jax.random.split(key)

    # Small, deterministic shapes; Ny=12 also exercises the padded/masked path.
    Nx, Ny, D = 16, 12, 32
    bandwidth = 2.0

    X = jax.random.normal(kx, (Nx, D), dtype=jnp.float32)
    Y = 0.5 * jax.random.normal(ky, (Ny, D), dtype=jnp.float32) + 0.25

    out = mmd(X, Y, bandwidth)
    out = jax.block_until_ready(out)

    ref = mmd_ref(X, Y, bandwidth)
    assert jnp.allclose(out, ref, rtol=1e-4, atol=1e-5), (out, ref)

    print("KERNEL_OK")
</pallas_src>

<mosaic_0001>
module attributes {stable_mosaic.version = 11 : i64} {
  func.func @_pairwise_sumexp_kernel(%arg0: i32, %arg1: i32, %arg2: memref<32x32xf32, #tpu.memory_space<vmem>>, %arg3: memref<16x32xf32, #tpu.memory_space<vmem>>, %arg4: memref<32x1xf32, #tpu.memory_space<vmem>>, %arg5: memref<1x16xf32, #tpu.memory_space<vmem>>, %arg6: memref<32x1xf32, #tpu.memory_space<vmem>>, %arg7: memref<32x1xf32, #tpu.memory_space<vmem>>) attributes {dimension_semantics = [#tpu.dimension_semantics<parallel>, #tpu.dimension_semantics<arbitrary>], iteration_bounds = array<i64: 1, 1>, scalar_prefetch = 0 : i64, scratch_operands = 1 : i64, tpu.core_type = #tpu.core_type<tc>, window_params = [{transform_indices = @transform_0, window_bounds = array<i64: 32, 32>}, {transform_indices = @transform_1, window_bounds = array<i64: 16, 32>}, {transform_indices = @transform_2, window_bounds = array<i64: 32, 1>}, {transform_indices = @transform_3, window_bounds = array<i64: 1, 16>}, {transform_indices = @transform_4, window_bounds = array<i64: 32, 1>}]} {
    %c0_i32 = arith.constant 0 : i32
    %0 = arith.cmpi eq, %arg1, %c0_i32 : i32
    %1 = arith.extui %0 : i1 to i32
    %c0_i32_0 = arith.constant 0 : i32
    %2 = arith.cmpi ne, %1, %c0_i32_0 : i32
    scf.if %2 {
      %cst_16 = arith.constant 0.000000e+00 : f32
      %23 = vector.broadcast %cst_16 : f32 to vector<32x1xf32>
      %c0_17 = arith.constant 0 : index
      %c0_18 = arith.constant 0 : index
      %24 = vector.load %arg7[%c0_17, %c0_18] : memref<32x1xf32, #tpu.memory_space<vmem>>, vector<32x1xf32>
      tpu.vector_store %arg7[%c0_17, %c0_18], %23 {strides = array<i32>} : memref<32x1xf32, #tpu.memory_space<vmem>>, vector<32x1xf32>,
    } else {
    }
    %c0 = arith.constant 0 : index
    %c0_1 = arith.constant 0 : index
    %3 = vector.load %arg2[%c0, %c0_1] : memref<32x32xf32, #tpu.memory_space<vmem>>, vector<32x32xf32>
    %c0_2 = arith.constant 0 : index
    %c0_3 = arith.constant 0 : index
    %4 = vector.load %arg3[%c0_2, %c0_3] : memref<16x32xf32, #tpu.memory_space<vmem>>, vector<16x32xf32>
    %cst = arith.constant dense<0.000000e+00> : vector<32x16xf32>
    %5 = tpu.matmul %3, %4, %cst {dimension_numbers = #tpu.dot_dimension_numbers<[1], [1], [0], [0], [0, 0, 1, 0], [], []>} : vector<32x32xf32>, vector<16x32xf32>, vector<32x16xf32> -> vector<32x16xf32>
    %cst_4 = arith.constant 1.000000e+00 : f32
    %6 = vector.broadcast %cst_4 : f32 to vector<32x16xf32>
    %7 = arith.mulf %5, %6 : vector<32x16xf32>
    %c0_5 = arith.constant 0 : index
    %c0_6 = arith.constant 0 : index
    %8 = vector.load %arg4[%c0_5, %c0_6] : memref<32x1xf32, #tpu.memory_space<vmem>>, vector<32x1xf32>
    %9 = vector.broadcast %8 : vector<32x1xf32> to vector<32x16xf32>
    %10 = arith.subf %7, %9 : vector<32x16xf32>
    %c0_7 = arith.constant 0 : index
    %c0_8 = arith.constant 0 : index
    %11 = vector.load %arg5[%c0_7, %c0_8] : memref<1x16xf32, #tpu.memory_space<vmem>>, vector<1x16xf32>
    %12 = vector.broadcast %11 : vector<1x16xf32> to vector<32x16xf32>
    %13 = arith.subf %10, %12 : vector<32x16xf32>
    %14 = math.exp %13 : vector<32x16xf32>
    %c0_9 = arith.constant 0 : index
    %c0_10 = arith.constant 0 : index
    %15 = vector.load %arg7[%c0_9, %c0_10] : memref<32x1xf32, #tpu.memory_space<vmem>>, vector<32x1xf32>
    %cst_11 = arith.constant dense<0.000000e+00> : vector<32xf32>
    %16 = vector.multi_reduction <add>, %14, %cst_11 [1] : vector<32x16xf32> to vector<32xf32>
    %17 = vector.shape_cast %16 : vector<32xf32> to vector<32x1xf32>
    %18 = arith.addf %15, %17 : vector<32x1xf32>
    %c0_12 = arith.constant 0 : index
    %c0_13 = arith.constant 0 : index
    %19 = vector.load %arg7[%c0_12, %c0_13] : memref<32x1xf32, #tpu.memory_space<vmem>>, vector<32x1xf32>
    tpu.vector_store %arg7[%c0_12, %c0_13], %18 {strides = array<i32>} : memref<32x1xf32, #tpu.memory_space<vmem>>, vector<32x1xf32>,
    %c0_i32_14 = arith.constant 0 : i32
    %20 = arith.cmpi eq, %arg1, %c0_i32_14 : i32
    %21 = arith.extui %20 : i1 to i32
    %c0_i32_15 = arith.constant 0 : i32
    %22 = arith.cmpi ne, %21, %c0_i32_15 : i32
    scf.if %22 {
      %c0_16 = arith.constant 0 : index
      %c0_17 = arith.constant 0 : index
      %23 = vector.load %arg7[%c0_16, %c0_17] : memref<32x1xf32, #tpu.memory_space<vmem>>, vector<32x1xf32>
      %24 = math.log %23 : vector<32x1xf32>
      %c0_18 = arith.constant 0 : index
      %c0_19 = arith.constant 0 : index
      %25 = vector.load %arg6[%c0_18, %c0_19] : memref<32x1xf32, #tpu.memory_space<vmem>>, vector<32x1xf32>
      tpu.vector_store %arg6[%c0_18, %c0_19], %24 {strides = array<i32>} : memref<32x1xf32, #tpu.memory_space<vmem>>, vector<32x1xf32>,
    } else {
    }
    return
  }
  func.func @transform_0(%arg0: i32, %arg1: i32) -> (i32, i32) {
    %c0_i32 = arith.constant 0 : i32
    %c0_i32_0 = arith.constant 0 : i32
    return %arg0, %c0_i32 : i32, i32
  }
  func.func @transform_1(%arg0: i32, %arg1: i32) -> (i32, i32) {
    %c0_i32 = arith.constant 0 : i32
    %c0_i32_0 = arith.constant 0 : i32
    return %arg1, %c0_i32 : i32, i32
  }
  func.func @transform_2(%arg0: i32, %arg1: i32) -> (i32, i32) {
    %c0_i32 = arith.constant 0 : i32
    %c0_i32_0 = arith.constant 0 : i32
    return %arg0, %c0_i32 : i32, i32
  }
  func.func @transform_3(%arg0: i32, %arg1: i32) -> (i32, i32) {
    %c0_i32 = arith.constant 0 : i32
    %c0_i32_0 = arith.constant 0 : i32
    return %c0_i32, %arg1 : i32, i32
  }
  func.func @transform_4(%arg0: i32, %arg1: i32) -> (i32, i32) {
    %c0_i32 = arith.constant 0 : i32
    %c0_i32_0 = arith.constant 0 : i32
    return %arg0, %c0_i32 : i32, i32
  }
}

</mosaic_0001>

<llo_original>
// kernel: tpu_custom_call.1
$region0: #{tpu_custom_call.1}
  #allocation0 [shape = 'u32[]', space=smem, size = 0x4, offset = 0x4, fixed_abs, tag = 'smem constant byte address 0x4 - core index']
  #allocation1 [shape = 'u32[72,128]{1,0:T(1,128)}', space=vmem, size = 0x9000, scoped, tag = 'internal scratch']
  #allocation2 [shape = 'f32[32,1]{1,0:T(8,128)}', space=vmem, size = 0x4000, scoped, tag = 'scratch operand']
  %s0 = inlined_call_operand.vmem [shape: f32[32,32], index: 0, kind: input, shape index: {}]
  %s1 = inlined_call_operand.hbm [shape: f32[16,32], index: 1, kind: input, shape index: {}]
  %s2 = inlined_call_operand.vmem [shape: f32[32,1], index: 2, kind: input, shape index: {}]
  %s3 = inlined_call_operand.vmem [shape: f32[1,16], index: 3, kind: input, shape index: {}]
  %s4 = inlined_call_operand.vmem [shape: f32[32,1], index: 4, kind: output, shape index: {}]
  %s5 = sld [smem:[#allocation0]]
  $region38: #{tpu_custom_call.1} parent=0
    _
  %s7 = ssub.s32 1, %s5
  %s8 = scalar_select 0, %s7, %s5
  $region1: #{tpu_custom_call.1} parent=0
    #allocation3 [shape = 'u8[8192]{0}', space=vmem, size = 0x2000, scoped, tag = 'input window, operand 1, single buffered']
    #allocation4 [shape = 's32[1]{0}', space=sflag, size = 0x4, scoped, tag = 'scoped memory for tpu_custom_call.1']
    %9 = vsyncpa [#allocation4], 0
    // Predicated region
    $region2: #{tpu_custom_call.1} parent=1 // pred_check
      _
    $region3: #{tpu_custom_call.1} parent=1 // pred_check_branch
      %11 = sbr.rel (0) target = $region5
    $region4: #{tpu_custom_call.1} parent=1 // pred_region
      _
    $region5: #{tpu_custom_call.1} parent=1 // pred_fallthru
      _
    // Predicated region
    $region6: #{tpu_custom_call.1} parent=1 // pred_check
      _
    $region7: #{tpu_custom_call.1} parent=1 // pred_check_branch
      %13 = sbr.rel (0) target = $region9
    $region8: #{tpu_custom_call.1} parent=1 // pred_region
      %15 = vsyncadd [#allocation4], 0
      %s16 = sshll.u32 %s1, 4
      %s17 = int_to_ptr.hbm [resolvable:$true] %s16
      %s18 = sshll.u32 [#allocation3], 4
      %s19 = int_to_ptr.vmem [resolvable:$true] %s18
      %24 = dma.hbm_to_vmem [thread:$0]  %s17, 256, %s19, [#allocation4], 128, 128, 8
    $region9: #{tpu_custom_call.1} parent=1 // pred_fallthru
      _
    // Predicated region
    $region10: #{tpu_custom_call.1} parent=1 // pred_check
      _
    $region11: #{tpu_custom_call.1} parent=1 // pred_check_branch
      %26 = sbr.rel (0) target = $region13
    $region12: #{tpu_custom_call.1} parent=1 // pred_region
      _
    $region13: #{tpu_custom_call.1} parent=1 // pred_fallthru
      _
    // Predicated region
    $region14: #{tpu_custom_call.1} parent=1 // pred_check
      _
    $region15: #{tpu_custom_call.1} parent=1 // pred_check_branch
      %28 = sbr.rel (0) target = $region17
    $region16: #{tpu_custom_call.1} parent=1 // pred_region
      _
    $region17: #{tpu_custom_call.1} parent=1 // pred_fallthru
      _
    // Predicated region
    $region18: #{tpu_custom_call.1} parent=1 // pred_check
      _
    $region19: #{tpu_custom_call.1} parent=1 // pred_check_branch
      %30 = sbr.rel (0) target = $region21
    $region20: #{tpu_custom_call.1} parent=1 // pred_region
      %32 = dma.done [#allocation4], 256
    $region21: #{tpu_custom_call.1} parent=1 // pred_fallthru
      _
    %p33 = scmp.eq.s32.totalorder 0, 0
    // Predicated region
    $region22: #{tpu_custom_call.1} parent=1 // pred_check
      %p34 = pneg %p33
    $region23: #{tpu_custom_call.1} parent=1 // pred_check_branch
      %36 = sbr.rel (%p34) target = $region25
    $region24: #{tpu_custom_call.1} parent=1 // pred_region
      %vm37 = vcmask 7168
      %38 = vst.msk [vmem:[#allocation2] sm:$0xff] %vm37, 0.0
      %39 = vst.msk [vmem:[#allocation2 + $0x8] sm:$0xff] %vm37, 0.0
      %40 = vst.msk [vmem:[#allocation2 + $0x10] sm:$0xff] %vm37, 0.0
      %41 = vst.msk [vmem:[#allocation2 + $0x18] sm:$0xff] %vm37, 0.0
    $region25: #{tpu_custom_call.1} parent=1 // pred_fallthru
      _
    %v42 = vld [vmem:[%s0] sm:$0xff]
    %v43 = vld [vmem:[%s0 + $0x8] sm:$0xff]
    %v44 = vld [vmem:[%s0 + $0x10] sm:$0xff]
    %v45 = vld [vmem:[%s0 + $0x18] sm:$0xff]
    %v46 = vld [vmem:[#allocation3] sm:$0xff]
    %v47 = vld [vmem:[#allocation3 + $0x8] sm:$0xff]
    %vm48 = vcmask 261120
    %v50 = vsel %vm48, %v42, 0
    %v53 = vsel %vm48, %v43, 0
    %v56 = vsel %vm48, %v44, 0
    %v59 = vsel %vm48, %v45, 0
    %v62 = vsel %vm48, %v46, 0
    %v65 = vsel %vm48, %v47, 0
    %67 = vmatpush.xpose.msra.mxu0 0.0
    %68 = vmatpush.xpose.msra.mxu0 0.0
    %69 = vmatpush.xpose.msra.mxu0 0.0
    %70 = vmatpush.xpose.msra.mxu0 0.0
    %71 = vmatpush.xpose.msra.mxu0 0.0
    %72 = vmatpush.xpose.msra.mxu0 0.0
    %73 = vmatpush.xpose.msra.mxu0 0.0
    %74 = vmatpush.xpose.msra.mxu0 0.0
    %75 = vmatpush.xpose.msra.mxu0 0.0
    %76 = vmatpush.xpose.msra.mxu0 0.0
    %77 = vmatpush.xpose.msra.mxu0 0.0
    %78 = vmatpush.xpose.msra.mxu0 0.0
    %79 = vmatpush.xpose.msra.mxu0 0.0
    %80 = vmatpush.xpose.msra.mxu0 0.0
    %81 = vmatpush.xpose.msra.mxu0 %v65
    %82 = vmatpush.xpose.msra.mxu0 %v62
    %83 = vmatmul.f32.gmra.mxu0 %v50
    %v84 = vpop.f32.mrf.mxu0
    %v85 = vadd.f32 0.0, %v84
    %86 = vmatmul.f32.gmra.mxu0 %v53
    %v87 = vpop.f32.mrf.mxu0
    %v88 = vadd.f32 0.0, %v87
    %89 = vmatmul.f32.gmra.mxu0 %v56
    %v90 = vpop.f32.mrf.mxu0
    %v91 = vadd.f32 0.0, %v90
    %92 = vmatmul.f32.gmra.mxu0 %v59
    %v93 = vpop.f32.mrf.mxu0
    %v94 = vadd.f32 0.0, %v93
    %95 = vdwg.mxu0
    %v96 = vld [vmem:[%s2] sm:$0xff]
    %v97 = vld [vmem:[%s2 + $0x8] sm:$0xff]
    %v98 = vld [vmem:[%s2 + $0x10] sm:$0xff]
    %v99 = vld [vmem:[%s2 + $0x18] sm:$0xff]
    %101 = vset.pattern.permute.xlu0 0
    %102 = vperm.xlu0 %101, %v96
    %v103 = vpop.permute.xlu0 %102
    %106 = vset.pattern.permute.xlu0 0
    %107 = vperm.xlu0 %106, %v97
    %v108 = vpop.permute.xlu0 %107
    %111 = vset.pattern.permute.xlu0 0
    %112 = vperm.xlu0 %111, %v98
    %v113 = vpop.permute.xlu0 %112
    %116 = vset.pattern.permute.xlu0 0
    %117 = vperm.xlu0 %116, %v99
    %v118 = vpop.permute.xlu0 %117
    %v120 = vsub.f32 %v85, %v103
    %v121 = vsub.f32 %v88, %v108
    %v122 = vsub.f32 %v91, %v113
    %v123 = vsub.f32 %v94, %v118
    %v124 = vld [vmem:[%s3] sm:$0x1]
    %v126 = vperm.slane %v124, 0
    %v128 = vsub.f32 %v120, %v126
    %v129 = vsub.f32 %v121, %v126
    %v130 = vsub.f32 %v122, %v126
    %v131 = vsub.f32 %v123, %v126
    %v132 = vmul.f32 %v128, 1.442695
    %v133 = vpow.pop %v132
    %v134 = vmul.f32 %v129, 1.442695
    %v135 = vpow.pop %v134
    %v136 = vmul.f32 %v130, 1.442695
    %v137 = vpow.pop %v136
    %v138 = vmul.f32 %v131, 1.442695
    %v139 = vpow.pop %v138
    %v140 = vld [vmem:[#allocation2] sm:$0xff]
    %v141 = vld [vmem:[#allocation2 + $0x8] sm:$0xff]
    %v142 = vld [vmem:[#allocation2 + $0x10] sm:$0xff]
    %v143 = vld [vmem:[#allocation2 + $0x18] sm:$0xff]
    %vm144 = vcmask 130048
    %v145 = vsel %vm144, %v133, 0.0
    %146 = vadd.xlane.f32.xlu0 %v145
    %v147 = vpop.xlane.xlu0 %146
    %v148 = vsel %vm144, %v135, 0.0
    %149 = vadd.xlane.f32.xlu0 %v148
    %v150 = vpop.xlane.xlu0 %149
    %v151 = vsel %vm144, %v137, 0.0
    %152 = vadd.xlane.f32.xlu0 %v151
    %v153 = vpop.xlane.xlu0 %152
    %v154 = vsel %vm144, %v139, 0.0
    %155 = vadd.xlane.f32.xlu0 %v154
    %v156 = vpop.xlane.xlu0 %155
    %v157 = vadd.f32 %v140, %v147
    %v158 = vadd.f32 %v141, %v150
    %v159 = vadd.f32 %v142, %v153
    %v160 = vadd.f32 %v143, %v156
    %vm161 = vcmask 7168
    %162 = vst.msk [vmem:[#allocation2] sm:$0xff] %vm161, %v157
    %163 = vst.msk [vmem:[#allocation2 + $0x8] sm:$0xff] %vm161, %v158
    %164 = vst.msk [vmem:[#allocation2 + $0x10] sm:$0xff] %vm161, %v159
    %165 = vst.msk [vmem:[#allocation2 + $0x18] sm:$0xff] %vm161, %v160
    // Predicated region
    $region26: #{tpu_custom_call.1} parent=1 // pred_check
      %p166 = pneg %p33
    $region27: #{tpu_custom_call.1} parent=1 // pred_check_branch
      %168 = sbr.rel (%p166) target = $region29
    $region28: #{tpu_custom_call.1} parent=1 // pred_region
      %v169 = vld [vmem:[#allocation2] sm:$0xff]
      %v170 = vld [vmem:[#allocation2 + $0x8] sm:$0xff]
      %v171 = vld [vmem:[#allocation2 + $0x10] sm:$0xff]
      %v172 = vld [vmem:[#allocation2 + $0x18] sm:$0xff]
      %v173 = vlog2.pop %v169
      %v174 = vmul.f32 %v173, 0.6931472
      %v175 = vlog2.pop %v170
      %v176 = vmul.f32 %v175, 0.6931472
      %v177 = vlog2.pop %v171
      %v178 = vmul.f32 %v177, 0.6931472
      %v179 = vlog2.pop %v172
      %v180 = vmul.f32 %v179, 0.6931472
      %181 = vst.msk [vmem:[%s4] sm:$0xff] %vm161, %v174
      %182 = vst.msk [vmem:[%s4 + $0x8] sm:$0xff] %vm161, %v176
      %183 = vst.msk [vmem:[%s4 + $0x10] sm:$0xff] %vm161, %v178
      %184 = vst.msk [vmem:[%s4 + $0x18] sm:$0xff] %vm161, %v180
    $region29: #{tpu_custom_call.1} parent=1 // pred_fallthru
      _
    // Predicated region
    $region30: #{tpu_custom_call.1} parent=1 // pred_check
      _
    $region31: #{tpu_custom_call.1} parent=1 // pred_check_branch
      %186 = sbr.rel (0) target = $region33
    $region32: #{tpu_custom_call.1} parent=1 // pred_region
      _
    $region33: #{tpu_custom_call.1} parent=1 // pred_fallthru
      _
    // Predicated region
    $region34: #{tpu_custom_call.1} parent=1 // pred_check
      _
    $region35: #{tpu_custom_call.1} parent=1 // pred_check_branch
      %188 = sbr.rel (0) target = $region37
    $region36: #{tpu_custom_call.1} parent=1 // pred_region
      _
    $region37: #{tpu_custom_call.1} parent=1 // pred_fallthru
      _
    %189 = vsyncpa [#allocation4], 1

</llo_original>
